<compile_context>
chip_gen: v5e
topology: v5e:2x2
jax: 0.10.0
libtpu: 0.0.40
codegen_flags: <defaults>
</compile_context>

<pallas_src>
import functools

import numpy as np

import jax
import jax.numpy as jnp
from jax.experimental import pallas as pl
from jax.experimental.pallas import tpu as pltpu

# ---------------------------------------------------------------------------
# Constants from DXPatch_Loss.__init__ (DX7 patch parameter layout):
#   6 operators x 21 params, then 19 global params -> 145 features.
_OP_WEIGHTS = [1] * 16 + [4, 4, 10, 4, 1]                            # 21
_GLOBAL_WEIGHTS = [1] * 8 + [10] + [1] * 10                          # 19
PATCH_WEIGHTS = _OP_WEIGHTS * 6 + _GLOBAL_WEIGHTS                    # 145

_OP_MAXES = [99] * 11 + [3, 3, 7, 3, 7, 99, 1, 31, 99, 14]           # 21
_GLOBAL_MAXES = [99] * 8 + [31, 7, 1] + [99] * 4 + [1, 5, 7, 48]     # 19
PATCH_MAXES = _OP_MAXES * 6 + _GLOBAL_MAXES                          # 145

D = len(PATCH_WEIGHTS)
assert D == 145 and len(PATCH_MAXES) == D

# Precompute the reciprocal of the maxes so the kernel does a VPU multiply
# instead of a long-latency f32 divide.
_W_F32 = np.asarray(PATCH_WEIGHTS, np.float32)
_INV_M_F32 = 1.0 / np.asarray(PATCH_MAXES, np.float32)

# Lane-dense repack of the constants: for a row-major (B, 145) array with
# B % 128 == 0, element (g, f, l) of the (B/128, 145, 128) view is feature
# (f*128 + l) % 145, so the matching constant tile is tile(const, 128).
_W_LANE = np.tile(_W_F32, 128).reshape(1, D, 128)
_INV_M_LANE = np.tile(_INV_M_F32, 128).reshape(1, D, 128)


def _cdiv(a, b):
    return -(-a // b)


def _round_up(n, m):
    return ((n + m - 1) // m) * m


def _dxpatch_block_kernel(x_ref, y_ref, w_ref, inv_m_ref, out_ref, *,
                          dim0_valid, dim0_block, need_mask):
    """One grid step: weighted L1 of this tile, reduced to a per-block scalar.

    x_ref / y_ref   : (dim0_block, D) or (dim0_block, D, 128) data tiles.
    w_ref / inv_m_ref : matching (1, ...) constant tiles (resident across steps).
    out_ref         : (1, 8, 128) VMEM block holding this block's partial sum.
    """
    x = x_ref[...].astype(jnp.float32)          # bf16/fp16 inputs upcast here
    y = y_ref[...].astype(jnp.float32)
    # y / patch_maxes folded into a multiply by the precomputed reciprocal.
    weighted = jnp.abs(x - y * inv_m_ref[...]) * w_ref[...]

    if need_mask:
        # Ragged tail: rows/packets past the end of the batch hold undefined
        # VMEM data.  Select (not multiply) so NaN/Inf garbage cannot leak in.
        idx0 = jax.lax.broadcasted_iota(jnp.int32, weighted.shape, 0)
        idx0 = idx0 + pl.program_id(0) * dim0_block
        weighted = jnp.where(idx0 < dim0_valid, weighted, 0.0)

    # Reduce the streamed leading axis first (VALU vreg adds), then a single
    # small XLU reduce per *block* (not per row) to produce the scalar.
    col = jnp.sum(weighted, axis=0, keepdims=True)
    block_sum = jnp.sum(col)
    out_ref[...] = jnp.full(out_ref.shape, block_sum, dtype=out_ref.dtype)


@functools.partial(jax.jit, static_argnames=("block_rows",))
def dxpatch_loss(x, y, *, block_rows=4096):
    """DXPatch_Loss.forward(x, y): sum(|x - y / patch_maxes| * patch_weights)."""
    if x.shape != y.shape:
        raise ValueError(f"x and y must have the same shape: {x.shape} vs {y.shape}")
    if x.shape[-1] != D:
        raise ValueError(f"last dim must be {D}, got {x.shape[-1]}")

    # Keep low-precision float inputs as-is (the kernel is HBM-bound; fewer
    # bytes is the biggest win).  The kernel upcasts to f32 for the math.
    if x.dtype not in (jnp.float32, jnp.bfloat16, jnp.float16):
        x = x.astype(jnp.float32)
    if y.dtype not in (jnp.float32, jnp.bfloat16, jnp.float16):
        y = y.astype(jnp.float32)

    x = x.reshape(-1, D)
    y = y.reshape(-1, D)
    B = x.shape[0]
    itemsize = max(jnp.dtype(x.dtype).itemsize, jnp.dtype(y.dtype).itemsize)

    lane_dense = (B >= 128) and (B % 128 == 0)
    if lane_dense:
        # 128 rows * 145 feats == 145 * 128: row-major (B, 145) reinterprets
        # for free as (B/128, 145, 128) -> no 145->256 lane padding.
        G = B // 128
        bg = max(1, min(block_rows // 128, _cdiv(G, 2)))  # >= 2 blocks when G >= 2
        if bg >= G:
            bg = G
        num_blocks = _cdiv(G, bg)
        need_mask = (G % bg) != 0
        xk = x.reshape(G, D, 128)
        yk = y.reshape(G, D, 128)
        wk = jnp.asarray(_W_LANE)
        invk = jnp.asarray(_INV_M_LANE)
        data_spec = pl.BlockSpec((bg, D, 128), lambda i: (i, 0, 0))
        const_spec = pl.BlockSpec((1, D, 128), lambda i: (0, 0, 0))
        dim0_valid, dim0_block = G, bg
        tile_bytes = bg * _round_up(D, 8) * 128 * itemsize
    else:
        # (tb, 145) layout; batch tile is a multiple of 16 (covers f32 & bf16
        # sublane rules) unless a single full-extent block covers the batch.
        tb = max(16, min(block_rows, _round_up(_cdiv(B, 2), 16)))
        if tb >= B:
            tb = B                         # single full-extent block, no mask
        num_blocks = _cdiv(B, tb)
        need_mask = (B % tb) != 0
        xk, yk = x, y
        wk = jnp.asarray(_W_F32).reshape(1, D)
        invk = jnp.asarray(_INV_M_F32).reshape(1, D)
        data_spec = pl.BlockSpec((tb, D), lambda i: (i, 0))
        const_spec = pl.BlockSpec((1, D), lambda i: (0, 0))
        dim0_valid, dim0_block = B, tb
        tile_bytes = tb * _round_up(D, 128) * itemsize

    # x + y, double-buffered, plus slack for constants / outputs / scratch.
    vmem_limit = int(min(100 << 20, max(32 << 20, 4 * tile_bytes + (8 << 20))))

    kernel = functools.partial(
        _dxpatch_block_kernel,
        dim0_valid=dim0_valid, dim0_block=dim0_block, need_mask=need_mask)

    partials = pl.pallas_call(
        kernel,
        out_shape=jax.ShapeDtypeStruct((num_blocks, 8, 128), jnp.float32),
        grid=(num_blocks,),
        in_specs=[data_spec, data_spec, const_spec, const_spec],
        out_specs=pl.BlockSpec((1, 8, 128), lambda i: (i, 0, 0)),
        compiler_params=pltpu.CompilerParams(
            dimension_semantics=("parallel",),
            vmem_limit_bytes=vmem_limit,
        ),
    )(xk, yk, wk, invk)

    # Tiny final reduction over the per-block scalars.
    return jnp.sum(partials[:, 0, 0])


def dxpatch_loss_ref(x, y):
    """Pure-JAX reference for verification (mirrors the PyTorch forward)."""
    w = jnp.asarray(_W_F32)
    m = jnp.asarray(PATCH_MAXES, jnp.float32)
    yn = y.astype(jnp.float32) / m
    return jnp.sum(jnp.abs(x.astype(jnp.float32) - yn) * w)


if __name__ == "__main__":
    key = jax.random.PRNGKey(0)
    keys = jax.random.split(key, 6)

    def _check(x, y, rtol, atol):
        got = jax.block_until_ready(dxpatch_loss(x, y))
        ref = jax.block_until_ready(dxpatch_loss_ref(x, y))
        assert jnp.allclose(got, ref, rtol=rtol, atol=atol), (got, ref)

    # 1) Tiny ragged batch -> single full-extent (12, 145) block.
    x = jax.random.uniform(keys[0], (12, D), jnp.float32)
    y = jax.random.uniform(keys[1], (12, D), jnp.float32, minval=0.0, maxval=99.0)
    _check(x, y, 1e-4, 1e-2)

    # 2) Batch not a multiple of the tile -> 2 blocks, in-kernel tail masking
    #    (no wrapper-side padding copy).
    x = jax.random.uniform(keys[2], (300, D), jnp.float32)
    y = jax.random.uniform(keys[3], (300, D), jnp.float32, minval=0.0, maxval=99.0)
    _check(x, y, 1e-4, 1e-1)

    # 3) Batch % 128 == 0 -> lane-dense (G, 145, 128) layout, bf16 inputs.
    x = jax.random.uniform(keys[4], (256, D), jnp.float32).astype(jnp.bfloat16)
    y = jax.random.uniform(keys[5], (256, D), jnp.float32,
                           minval=0.0, maxval=99.0).astype(jnp.bfloat16)
    _check(x, y, 2e-3, 1e-1)

    print("KERNEL_OK")
</pallas_src>

<mosaic_0001>
module attributes {stable_mosaic.version = 11 : i64} {
  func.func @_dxpatch_block_kernel(%arg0: i32, %arg1: memref<12x145xf32, #tpu.memory_space<vmem>>, %arg2: memref<12x145xf32, #tpu.memory_space<vmem>>, %arg3: memref<1x145xf32, #tpu.memory_space<vmem>>, %arg4: memref<1x145xf32, #tpu.memory_space<vmem>>, %arg5: memref<1x8x128xf32, #tpu.memory_space<vmem>>) attributes {dimension_semantics = [#tpu.dimension_semantics<parallel>], iteration_bounds = array<i64: 1>, scalar_prefetch = 0 : i64, scratch_operands = 0 : i64, tpu.core_type = #tpu.core_type<tc>, window_params = [{transform_indices = @transform_0, window_bounds = array<i64: 12, 145>}, {transform_indices = @transform_1, window_bounds = array<i64: 12, 145>}, {pipeline_mode = #tpu.pipeline_mode<synchronous>, transform_indices = @transform_2, window_bounds = array<i64: 1, 145>}, {pipeline_mode = #tpu.pipeline_mode<synchronous>, transform_indices = @transform_3, window_bounds = array<i64: 1, 145>}, {transform_indices = @transform_4, window_bounds = array<i64: 1, 8, 128>}]} {
    %c0 = arith.constant 0 : index
    %c0_0 = arith.constant 0 : index
    %0 = vector.load %arg1[%c0, %c0_0] : memref<12x145xf32, #tpu.memory_space<vmem>>, vector<12x145xf32>
    %c0_1 = arith.constant 0 : index
    %c0_2 = arith.constant 0 : index
    %1 = vector.load %arg2[%c0_1, %c0_2] : memref<12x145xf32, #tpu.memory_space<vmem>>, vector<12x145xf32>
    %c0_3 = arith.constant 0 : index
    %c0_4 = arith.constant 0 : index
    %2 = vector.load %arg4[%c0_3, %c0_4] : memref<1x145xf32, #tpu.memory_space<vmem>>, vector<1x145xf32>
    %3 = vector.broadcast %2 : vector<1x145xf32> to vector<12x145xf32>
    %4 = arith.mulf %1, %3 : vector<12x145xf32>
    %5 = arith.subf %0, %4 : vector<12x145xf32>
    %6 = math.absf %5 : vector<12x145xf32>
    %c0_5 = arith.constant 0 : index
    %c0_6 = arith.constant 0 : index
    %7 = vector.load %arg3[%c0_5, %c0_6] : memref<1x145xf32, #tpu.memory_space<vmem>>, vector<1x145xf32>
    %8 = vector.broadcast %7 : vector<1x145xf32> to vector<12x145xf32>
    %9 = arith.mulf %6, %8 : vector<12x145xf32>
    %cst = arith.constant dense<0.000000e+00> : vector<145xf32>
    %10 = vector.multi_reduction <add>, %9, %cst [0] : vector<12x145xf32> to vector<145xf32>
    %11 = vector.shape_cast %10 : vector<145xf32> to vector<1x145xf32>
    %12 = vector.shape_cast %11 : vector<1x145xf32> to vector<1x1x145xf32>
    %cst_7 = arith.constant dense<0.000000e+00> : vector<1xf32>
    %13 = vector.multi_reduction <add>, %12, %cst_7 [1, 2] : vector<1x1x145xf32> to vector<1xf32>
    %14 = vector.shape_cast %13 : vector<1xf32> to vector<1x1x1xf32>
    %15 = vector.extract %14[0, 0, 0] : f32 from vector<1x1x1xf32>
    %16 = vector.broadcast %15 : f32 to vector<1x8x128xf32>
    %c0_8 = arith.constant 0 : index
    %c0_9 = arith.constant 0 : index
    %c0_10 = arith.constant 0 : index
    %17 = vector.load %arg5[%c0_8, %c0_9, %c0_10] : memref<1x8x128xf32, #tpu.memory_space<vmem>>, vector<1x8x128xf32>
    tpu.vector_store %arg5[%c0_8, %c0_9, %c0_10], %16 {strides = array<i32>} : memref<1x8x128xf32, #tpu.memory_space<vmem>>, vector<1x8x128xf32>,
    return
  }
  func.func @transform_0(%arg0: i32) -> (i32, i32) {
    %c0_i32 = arith.constant 0 : i32
    %c0_i32_0 = arith.constant 0 : i32
    return %arg0, %c0_i32 : i32, i32
  }
  func.func @transform_1(%arg0: i32) -> (i32, i32) {
    %c0_i32 = arith.constant 0 : i32
    %c0_i32_0 = arith.constant 0 : i32
    return %arg0, %c0_i32 : i32, i32
  }
  func.func @transform_2(%arg0: i32) -> (i32, i32) {
    %c0_i32 = arith.constant 0 : i32
    %c0_i32_0 = arith.constant 0 : i32
    %c0_i32_1 = arith.constant 0 : i32
    return %c0_i32, %c0_i32_0 : i32, i32
  }
  func.func @transform_3(%arg0: i32) -> (i32, i32) {
    %c0_i32 = arith.constant 0 : i32
    %c0_i32_0 = arith.constant 0 : i32
    %c0_i32_1 = arith.constant 0 : i32
    return %c0_i32, %c0_i32_0 : i32, i32
  }
  func.func @transform_4(%arg0: i32) -> (i32, i32, i32) {
    %c0_i32 = arith.constant 0 : i32
    %c0_i32_0 = arith.constant 0 : i32
    %c0_i32_1 = arith.constant 0 : i32
    return %arg0, %c0_i32, %c0_i32_0 : i32, i32, i32
  }
}

</mosaic_0001>

<llo_original>
// kernel: dxpatch_loss.1
$region0: #{dxpatch_loss.1}
  #allocation0 [shape = 'u32[]', space=smem, size = 0x4, offset = 0x4, fixed_abs, tag = 'smem constant byte address 0x4 - core index']
  #allocation1 [shape = 'u32[72,128]{1,0:T(1,128)}', space=vmem, size = 0x9000, scoped, tag = 'internal scratch']
  %s0 = inlined_call_operand.hbm [shape: f32[12,145], index: 0, kind: input, shape index: {}]
  %s1 = inlined_call_operand.hbm [shape: f32[12,145], index: 1, kind: input, shape index: {}]
  %s2 = inlined_call_operand.hbm [shape: f32[1,145], index: 2, kind: input, shape index: {}]
  %s3 = inlined_call_operand.vmem [shape: f32[1,145], index: 3, kind: input, shape index: {}]
  %s4 = inlined_call_operand.vmem [shape: f32[1,8,128], index: 4, kind: output, shape index: {}]
  %s5 = sld [smem:[#allocation0]]
  $region38: #{dxpatch_loss.1} parent=0
    _
  %s7 = ssub.s32 1, %s5
  %s8 = scalar_select 0, %s7, %s5
  $region1: #{dxpatch_loss.1} parent=0
    #allocation2 [shape = 'u8[16384]{0}', space=vmem, size = 0x4000, scoped, tag = 'input window, operand 0, single buffered']
    #allocation3 [shape = 's32[1]{0}', space=sflag, size = 0x4, scoped, tag = 'scoped memory for dxpatch_loss.1']
    #allocation4 [shape = 'u8[16384]{0}', space=vmem, size = 0x4000, scoped, tag = 'input window, operand 1, single buffered']
    #allocation5 [shape = 's32[1]{0}', space=sflag, size = 0x4, scoped, tag = 'scoped memory for dxpatch_loss.1']
    #allocation6 [shape = 'u8[1024]{0}', space=vmem, size = 0x400, scoped, tag = 'input window, operand 2, single buffered']
    %9 = vsyncpa [#allocation3], 0
    %10 = vsyncpa [#allocation5], 0
    // Predicated region
    $region2: #{dxpatch_loss.1} parent=1 // pred_check
      _
    $region3: #{dxpatch_loss.1} parent=1 // pred_check_branch
      %12 = sbr.rel (0) target = $region5
    $region4: #{dxpatch_loss.1} parent=1 // pred_region
      %14 = vsyncadd [#allocation3], 0
      %s15 = sshll.u32 %s0, 4
      %s16 = int_to_ptr.hbm [resolvable:$true] %s15
      %s17 = sshll.u32 [#allocation2], 4
      %s18 = int_to_ptr.vmem [resolvable:$true] %s17
      %23 = dma.hbm_to_vmem [thread:$0]  %s16, 512, %s18, [#allocation3], 256, 256, 16
    $region5: #{dxpatch_loss.1} parent=1 // pred_fallthru
      _
    // Predicated region
    $region6: #{dxpatch_loss.1} parent=1 // pred_check
      _
    $region7: #{dxpatch_loss.1} parent=1 // pred_check_branch
      %25 = sbr.rel (0) target = $region9
    $region8: #{dxpatch_loss.1} parent=1 // pred_region
      %27 = vsyncadd [#allocation5], 0
      %s28 = sshll.u32 %s1, 4
      %s29 = int_to_ptr.hbm [resolvable:$true] %s28
      %s30 = sshll.u32 [#allocation4], 4
      %s31 = int_to_ptr.vmem [resolvable:$true] %s30
      %36 = dma.hbm_to_vmem [thread:$0]  %s29, 512, %s31, [#allocation5], 256, 256, 16
    $region9: #{dxpatch_loss.1} parent=1 // pred_fallthru
      _
    // Predicated region
    $region10: #{dxpatch_loss.1} parent=1 // pred_check
      _
    $region11: #{dxpatch_loss.1} parent=1 // pred_check_branch
      %38 = sbr.rel (0) target = $region13
    $region12: #{dxpatch_loss.1} parent=1 // pred_region
      %40 = vsyncadd [#allocation5], 0
      %s42 = sshll.u32 %s2, 4
      %s43 = int_to_ptr.hbm [resolvable:$true] %s42
      %s44 = sshll.u32 [#allocation6], 4
      %s45 = int_to_ptr.vmem [resolvable:$true] %s44
      %47 = dma.hbm_to_vmem [thread:$0]  %s43, 32, %s45, [#allocation5]
    $region13: #{dxpatch_loss.1} parent=1 // pred_fallthru
      _
    // Predicated region
    $region14: #{dxpatch_loss.1} parent=1 // pred_check
      _
    $region15: #{dxpatch_loss.1} parent=1 // pred_check_branch
      %49 = sbr.rel (0) target = $region17
    $region16: #{dxpatch_loss.1} parent=1 // pred_region
      _
    $region17: #{dxpatch_loss.1} parent=1 // pred_fallthru
      _
    // Predicated region
    $region18: #{dxpatch_loss.1} parent=1 // pred_check
      _
    $region19: #{dxpatch_loss.1} parent=1 // pred_check_branch
      %51 = sbr.rel (0) target = $region21
    $region20: #{dxpatch_loss.1} parent=1 // pred_region
      %53 = dma.done [#allocation3], 512
    $region21: #{dxpatch_loss.1} parent=1 // pred_fallthru
      _
    // Predicated region
    $region22: #{dxpatch_loss.1} parent=1 // pred_check
      _
    $region23: #{dxpatch_loss.1} parent=1 // pred_check_branch
      %55 = sbr.rel (0) target = $region25
    $region24: #{dxpatch_loss.1} parent=1 // pred_region
      %57 = dma.done [#allocation5], 512
    $region25: #{dxpatch_loss.1} parent=1 // pred_fallthru
      _
    // Predicated region
    $region26: #{dxpatch_loss.1} parent=1 // pred_check
      _
    $region27: #{dxpatch_loss.1} parent=1 // pred_check_branch
      %59 = sbr.rel (0) target = $region29
    $region28: #{dxpatch_loss.1} parent=1 // pred_region
      %61 = dma.done [#allocation5], 32
    $region29: #{dxpatch_loss.1} parent=1 // pred_fallthru
      _
    %v62 = vld [vmem:[#allocation2] sm:$0xff]
    %v63 = vld [vmem:[#allocation2 + $0x8] sm:$0xff]
    %v64 = vld [vmem:[#allocation2 + $0x10] sm:$0xf]
    %v65 = vld [vmem:[#allocation2 + $0x18] sm:$0xf]
    %v66 = vld [vmem:[#allocation4] sm:$0xff]
    %v67 = vld [vmem:[#allocation4 + $0x8] sm:$0xff]
    %v68 = vld [vmem:[#allocation4 + $0x10] sm:$0xf]
    %v69 = vld [vmem:[#allocation4 + $0x18] sm:$0xf]
    %v70 = vld [vmem:[%s3] sm:$0x3]
    %v72 = vperm.slane %v70, 0
    %v73 = vperm.slane %v70, 1
    %v76 = vmul.f32 %v66, %v72
    %v77 = vmul.f32 %v67, %v73
    %v78 = vmul.f32 %v68, %v72
    %v79 = vmul.f32 %v69, %v73
    %v80 = vsub.f32 %v62, %v76
    %v81 = vsub.f32 %v63, %v77
    %v82 = vsub.f32 %v64, %v78
    %v83 = vsub.f32 %v65, %v79
    %v84 = vand.u32 2147483647, %v80
    %v85 = vand.u32 2147483647, %v81
    %v86 = vand.u32 2147483647, %v82
    %v87 = vand.u32 2147483647, %v83
    %v88 = vld [vmem:[#allocation6] sm:$0x3]
    %v90 = vperm.slane %v88, 0
    %v91 = vperm.slane %v88, 1
    %v94 = vmul.f32 %v84, %v90
    %v95 = vmul.f32 %v85, %v91
    %v96 = vmul.f32 %v86, %v90
    %v97 = vmul.f32 %v87, %v91
    %vm98 = vcmask 1043456
    %v99 = vsel %vm98, %v96, 0.0
    %v100 = vadd.f32 %v94, %v99
    %v101 = vrot.slane %v100, 4
    %v102 = vadd.f32 %v100, %v101
    %v103 = vrot.slane %v102, 2
    %v104 = vadd.f32 %v102, %v103
    %v105 = vrot.slane %v104, 1
    %v106 = vadd.f32 %v104, %v105
    %vm107 = vcmask 138240
    %v108 = vsel %vm107, %v95, 0.0
    %vm109 = vcmask 134144
    %v110 = vsel %vm109, %v97, 0.0
    %v111 = vadd.f32 %v108, %v110
    %v112 = vrot.slane %v111, 4
    %v113 = vadd.f32 %v111, %v112
    %v114 = vrot.slane %v113, 2
    %v115 = vadd.f32 %v113, %v114
    %v116 = vrot.slane %v115, 1
    %v117 = vadd.f32 %v115, %v116
    %vm118 = vcmask 1040384
    %v119 = vsel %vm118, %v106, 0.0
    %vm120 = vcmask 131072
    %v121 = vsel %vm120, %v117, 0.0
    %v122 = vadd.f32 %v119, %v121
    %123 = vadd.xlane.f32.xlu0 %v122
    %v124 = vpop.xlane.xlu0 %123
    %v125 = vrot.slane %v124, 4
    %v126 = vadd.f32 %v124, %v125
    %v127 = vrot.slane %v126, 2
    %v128 = vadd.f32 %v126, %v127
    %v129 = vrot.slane %v128, 1
    %v130 = vadd.f32 %v128, %v129
    %s131 = vtos %v130
    %v132 = vstv %s131
    %133 = vst [vmem:[%s4] sm:$0xff] %v132
    // Predicated region
    $region30: #{dxpatch_loss.1} parent=1 // pred_check
      _
    $region31: #{dxpatch_loss.1} parent=1 // pred_check_branch
      %135 = sbr.rel (0) target = $region33
    $region32: #{dxpatch_loss.1} parent=1 // pred_region
      _
    $region33: #{dxpatch_loss.1} parent=1 // pred_fallthru
      _
    // Predicated region
    $region34: #{dxpatch_loss.1} parent=1 // pred_check
      _
    $region35: #{dxpatch_loss.1} parent=1 // pred_check_branch
      %137 = sbr.rel (0) target = $region37
    $region36: #{dxpatch_loss.1} parent=1 // pred_region
      _
    $region37: #{dxpatch_loss.1} parent=1 // pred_fallthru
      _
    %138 = vsyncpa [#allocation3], 1
    %139 = vsyncpa [#allocation5], 1

</llo_original>
